<compile_context>
chip_gen: v7x
topology: tpu7x:2x2x1
jax: 0.10.0
libtpu: 0.0.40
codegen_flags: <defaults>
</compile_context>

<pallas_src>
import math

import numpy as np

import jax
import jax.numpy as jnp
from jax.experimental import pallas as pl
from jax.experimental.pallas import tpu as pltpu


def _resize_matrix_np(in_size: int, out_size: int) -> np.ndarray:
    """(out_size, in_size) bilinear weights, PyTorch align_corners=False semantics."""
    scale = in_size / out_size
    i = np.arange(out_size, dtype=np.float64)
    src = np.maximum((i + 0.5) * scale - 0.5, 0.0)          # PyTorch clamps negative src to 0
    i0 = np.minimum(np.floor(src).astype(np.int64), in_size - 1)
    i1 = np.minimum(i0 + 1, in_size - 1)
    w1 = src - i0
    w0 = 1.0 - w1
    mat = np.zeros((out_size, in_size), dtype=np.float64)
    rows = np.arange(out_size)
    np.add.at(mat, (rows, i0), w0)
    np.add.at(mat, (rows, i1), w1)                          # i0 == i1 at edge -> weights sum to 1
    return mat.astype(np.float32)


def _round_up(x: int, m: int) -> int:
    return ((x + m - 1) // m) * m


def _round_down(x: int, m: int) -> int:
    return (x // m) * m


def _vmem_capacity_bytes() -> int:
    """Physical VMEM of the local chip (85% of this is used as the request cap)."""
    try:
        cap = getattr(pltpu.get_tpu_info(), "vmem_capacity_bytes", None)
        if cap:
            return int(cap)
    except Exception:
        pass
    return 64 * 1024 * 1024        # conservative default = v7x per-TensorCore VMEM


def _make_resize_kernel(P: int, HW: int, SS: int, cast_to_f32: bool, out_int_range):
    """Kernel refs: x_ref (tb, P*HW), w_ref (HW, SS), o_ref (tb, P*SS)."""

    def kernel(x_ref, w_ref, o_ref):
        x = x_ref[...]
        if cast_to_f32:
            x = x.astype(jnp.float32)                        # VPU cast for int / f16 inputs
        w = w_ref[...]
        # Static unrolled loop over the P packed image slots: P small dense matmuls
        # against ONE shared (HW, SS) weight (no block-diagonal kron(eye(P), W), which
        # would cost P x MXU FLOPs and P^2 x weight VMEM/DMA).
        chunks = [
            jnp.dot(x[:, p * HW:(p + 1) * HW], w, preferred_element_type=jnp.float32)
            for p in range(P)
        ]
        acc = chunks[0] if P == 1 else jnp.concatenate(chunks, axis=-1)
        if out_int_range is not None:                        # PyTorch rounds, not truncates
            lo, hi = out_int_range
            acc = jnp.clip(jnp.round(acc), lo, hi)
        o_ref[...] = acc.astype(o_ref.dtype)                 # one lane-dense full-block store

    return kernel


def short_scale_imgs(x: jnp.ndarray, size: int) -> jnp.ndarray:
    """Bilinear-resize every (H, W) slice of a (C, T, H, W) video to (size, size)."""
    C, T, H, W = x.shape
    S = int(size)
    B = C * T
    HW, SS = H * W, S * S
    in_dtype = jnp.dtype(x.dtype)
    itemsize = in_dtype.itemsize

    # ---- dtype plan: bf16 stays bf16 (fast MXU path), f32 stays exact, ints cast. ----
    if in_dtype == jnp.dtype(jnp.bfloat16):
        w_dtype, cast_to_f32 = jnp.bfloat16, False
    elif in_dtype == jnp.dtype(jnp.float32):
        w_dtype, cast_to_f32 = jnp.float32, False
    else:
        w_dtype, cast_to_f32 = jnp.float32, True
    out_int_range = None
    if jnp.issubdtype(in_dtype, jnp.integer):
        info = jnp.iinfo(in_dtype)
        out_int_range = (float(info.min), float(info.max))

    # ---- pack P images per output row so the row length (P*S*S) is lane-dense. ----
    P = 128 // math.gcd(SS, 128)
    if P > 8:
        # TODO(synk): odd S*S would need a huge unroll; keep unpacked rows instead
        # (output stores may be lane-masked in that rare case).
        P = 1

    # ---- host-built (numpy) compile-time weight: out_flat = x_flat @ kron(Wy, Wx).T ----
    wy = _resize_matrix_np(H, S)                             # (S, H)
    wx = _resize_matrix_np(W, S)                             # (S, W)
    w_small = jnp.asarray(np.kron(wy, wx).T, dtype=w_dtype)  # (H*W, S*S)
    w_itemsize = jnp.dtype(w_dtype).itemsize

    # ---- pad batch to a multiple of P (a few zero images) instead of masked stores. ----
    xb = x.reshape(B, HW)
    B_pad = _round_up(B, P)
    if B_pad != B:
        xb = jnp.pad(xb, ((0, B_pad - B), (0, 0)))
    rows = B_pad // P
    Kdim, Ndim = P * HW, P * SS
    xb = xb.reshape(rows, Kdim)                              # metadata-only reshape

    # ---- row-tile size: dtype-, shape- and chip-aware. ----
    row_align = max(8, 32 // itemsize)                       # sublane packing: f32 8 / bf16 16 / i8 32
    kpad = _round_up(Kdim, 128)
    npad = _round_up(Ndim, 128)
    vmem_cap = _vmem_capacity_bytes()
    budget = int(0.85 * vmem_cap)                            # valid on v7x (64 MiB) and v5e/v6e (128 MiB)
    target_in_bytes = (2 << 20) if vmem_cap <= (64 << 20) else (4 << 20)

    w_vmem = 2 * _round_up(HW, 32) * _round_up(SS, 128) * w_itemsize   # double-buffered (tiny)
    per_row = 2 * kpad * itemsize + 2 * npad * itemsize + npad * 4     # dbl-buffered in/out + f32 acc
    if cast_to_f32:
        per_row += kpad * 4
    headroom = 2 << 20

    tb_floor = min(rows, _round_up(128, row_align))          # keep the MXU M-dim busy
    tb_target = max(tb_floor, target_in_bytes // max(1, kpad * itemsize))
    tb_budget = max(row_align, (budget - w_vmem - headroom) // max(1, per_row))
    tb = min(rows, tb_target, tb_budget)
    if rows >= 2 * row_align:                                # >= 2 grid steps so "parallel" can
        half = max(row_align, _round_down(-(-rows // 2), row_align))   # use both v7x TensorCores
        tb = min(tb, half)
    if tb < rows:
        tb = max(row_align, _round_down(tb, row_align))      # block sublane divisibility
    else:
        tb = rows                                            # full-extent block is always legal
    grid = (pl.cdiv(rows, tb),)

    vmem_limit = int(min(budget, max(tb * per_row + w_vmem + headroom, 16 << 20)))

    # Accurate (non-inflated) scheduling hint: 2*B*H*W*S*S MACs against the small weight.
    cost = pl.CostEstimate(
        flops=2 * B_pad * HW * SS,
        transcendentals=0,
        bytes_accessed=B_pad * HW * itemsize + B_pad * SS * itemsize + HW * SS * w_itemsize,
    )

    kernel = _make_resize_kernel(P, HW, SS, cast_to_f32, out_int_range)
    out = pl.pallas_call(
        kernel,
        out_shape=jax.ShapeDtypeStruct((rows, Ndim), x.dtype),
        grid=grid,
        in_specs=[
            pl.BlockSpec((tb, Kdim), lambda i: (i, 0)),
            # Constant index_map -> the (tiny) weight stays resident across grid steps.
            # (pl.Buffered(1) single-buffering intentionally skipped: after dropping the
            #  block-diagonal kron the weight is KiB-scale, so its 2nd buffer is noise.)
            pl.BlockSpec((HW, SS), lambda i: (0, 0)),
        ],
        out_specs=pl.BlockSpec((tb, Ndim), lambda i: (i, 0)),
        compiler_params=pltpu.CompilerParams(
            dimension_semantics=("parallel",),
            vmem_limit_bytes=vmem_limit,
        ),
        cost_estimate=cost,
    )(xb, w_small)

    # Pure-metadata reshapes (plus a slice if the batch was padded).
    out = out.reshape(B_pad, S, S)
    if B_pad != B:
        out = out[:B]
    return out.reshape(C, T, S, S)


if __name__ == "__main__":
    size = 8

    def ref_resize(x, s):
        wy = jnp.asarray(_resize_matrix_np(x.shape[2], s))
        wx = jnp.asarray(_resize_matrix_np(x.shape[3], s))
        return jnp.einsum("oh,cthw,pw->ctop", wy, x.astype(jnp.float32), wx)

    # Primary case: (C, T, H, W) = (4, 8, 16, 16) -> (4, 8, 8, 8), f32 (exact path).
    x = jax.random.normal(jax.random.PRNGKey(0), (4, 8, 16, 16), dtype=jnp.float32)
    y = jax.block_until_ready(short_scale_imgs(x, size))
    assert y.shape == (4, 8, size, size), y.shape
    ref = ref_resize(x, size)
    assert jnp.allclose(y, ref, atol=1e-4, rtol=1e-4), float(jnp.max(jnp.abs(y - ref)))

    # Odd batch (exercises the pad-to-multiple-of-P path), f32.
    x2 = jax.random.normal(jax.random.PRNGKey(1), (3, 5, 16, 16), dtype=jnp.float32)
    y2 = jax.block_until_ready(short_scale_imgs(x2, size))
    ref2 = ref_resize(x2, size)
    assert y2.shape == (3, 5, size, size), y2.shape
    assert jnp.allclose(y2, ref2, atol=1e-4, rtol=1e-4), float(jnp.max(jnp.abs(y2 - ref2)))

    # bf16 input (native bf16 MXU path), loose tolerance.
    y3 = jax.block_until_ready(short_scale_imgs(x.astype(jnp.bfloat16), size))
    assert y3.shape == (4, 8, size, size), y3.shape
    assert jnp.allclose(y3.astype(jnp.float32), ref, atol=5e-2, rtol=5e-2)

    print("KERNEL_OK")
</pallas_src>

<mosaic_0001>
module attributes {stable_mosaic.version = 11 : i64} {
  func.func @kernel(%arg0: i32, %arg1: memref<8x512xf32, #tpu.memory_space<vmem>>, %arg2: memref<256x64xf32, #tpu.memory_space<vmem>>, %arg3: memref<8x128xf32, #tpu.memory_space<vmem>>) attributes {dimension_semantics = [#tpu.dimension_semantics<parallel>], iteration_bounds = array<i64: 2>, scalar_prefetch = 0 : i64, scratch_operands = 0 : i64, tpu.core_type = #tpu.core_type<tc>, window_params = [{transform_indices = @transform_0, window_bounds = array<i64: 8, 512>}, {pipeline_mode = #tpu.pipeline_mode<synchronous>, transform_indices = @transform_1, window_bounds = array<i64: 256, 64>}, {transform_indices = @transform_2, window_bounds = array<i64: 8, 128>}]} {
    %c0 = arith.constant 0 : index
    %c0_0 = arith.constant 0 : index
    %0 = vector.load %arg1[%c0, %c0_0] : memref<8x512xf32, #tpu.memory_space<vmem>>, vector<8x512xf32>
    %c0_1 = arith.constant 0 : index
    %c0_2 = arith.constant 0 : index
    %1 = vector.load %arg2[%c0_1, %c0_2] : memref<256x64xf32, #tpu.memory_space<vmem>>, vector<256x64xf32>
    %2 = vector.extract_strided_slice %0 {offsets = [0, 0], sizes = [8, 256], strides = [1, 1]} : vector<8x512xf32> to vector<8x256xf32>
    %cst = arith.constant dense<0.000000e+00> : vector<8x64xf32>
    %3 = tpu.matmul %2, %1, %cst {dimension_numbers = #tpu.dot_dimension_numbers<[1], [0], [0], [1], [0, 0, 1, 1], [], []>} : vector<8x256xf32>, vector<256x64xf32>, vector<8x64xf32> -> vector<8x64xf32>
    %4 = vector.extract_strided_slice %0 {offsets = [0, 256], sizes = [8, 256], strides = [1, 1]} : vector<8x512xf32> to vector<8x256xf32>
    %cst_3 = arith.constant dense<0.000000e+00> : vector<8x64xf32>
    %5 = tpu.matmul %4, %1, %cst_3 {dimension_numbers = #tpu.dot_dimension_numbers<[1], [0], [0], [1], [0, 0, 1, 1], [], []>} : vector<8x256xf32>, vector<256x64xf32>, vector<8x64xf32> -> vector<8x64xf32>
    %6 = tpu.concatenate %3, %5 in 1 : vector<8x64xf32>, vector<8x64xf32> -> vector<8x128xf32>
    %c0_4 = arith.constant 0 : index
    %c0_5 = arith.constant 0 : index
    %7 = vector.load %arg3[%c0_4, %c0_5] : memref<8x128xf32, #tpu.memory_space<vmem>>, vector<8x128xf32>
    tpu.vector_store %arg3[%c0_4, %c0_5], %6 {strides = array<i32>} : memref<8x128xf32, #tpu.memory_space<vmem>>, vector<8x128xf32>,
    return
  }
  func.func @transform_0(%arg0: i32) -> (i32, i32) {
    %c0_i32 = arith.constant 0 : i32
    %c0_i32_0 = arith.constant 0 : i32
    return %arg0, %c0_i32 : i32, i32
  }
  func.func @transform_1(%arg0: i32) -> (i32, i32) {
    %c0_i32 = arith.constant 0 : i32
    %c0_i32_0 = arith.constant 0 : i32
    %c0_i32_1 = arith.constant 0 : i32
    return %c0_i32, %c0_i32_0 : i32, i32
  }
  func.func @transform_2(%arg0: i32) -> (i32, i32) {
    %c0_i32 = arith.constant 0 : i32
    %c0_i32_0 = arith.constant 0 : i32
    return %arg0, %c0_i32 : i32, i32
  }
}

</mosaic_0001>

<llo_original>
// kernel: tpu_custom_call.1
$region0: #{tpu_custom_call.1}
  #allocation0 [shape = 'u32[]', space=smem, size = 0x4, offset = 0x4, fixed_abs, tag = 'smem constant byte address 0x4 - core index']
  #allocation1 [shape = 'u32[144,128]{1,0:T(1,128)}', space=vmem, size = 0x12000, scoped, tag = 'internal scratch']
  %s0 = inlined_call_operand.vmem [shape: f32[16,512], index: 0, kind: input, shape index: {}]
  %s1 = inlined_call_operand.vmem [shape: f32[256,64], index: 1, kind: input, shape index: {}]
  %s2 = inlined_call_operand.hbm [shape: f32[16,128], index: 2, kind: output, shape index: {}]
  %s3 = sld [smem:[#allocation0]]
  $region41: #{tpu_custom_call.1} parent=0
    _
  %s5 = ssub.s32 1, %s3
  %s6 = scalar_select 0, %s5, %s3
  $region1: #{tpu_custom_call.1} parent=0
    #allocation2 [shape = 'u8[8192]{0}', space=vmem, size = 0x2000, scoped, tag = 'output window, operand 0']
    #allocation3 [shape = 's32[2]{0}', space=sflag, size = 0x8, scoped, tag = 'scoped memory for tpu_custom_call.1']
    %7 = vsyncpa [#allocation3], 0
    %s8 = scalar_lea.sflag [#allocation3], 1
    %9 = vsyncpa %s8, 0
    loop: start=0, step=1, limit=4
    $region2: #{tpu_custom_call.1} parent=1 // loop_pre_header
      _
    $region3: #{tpu_custom_call.1} parent=1 // loop_header
      %s11 = sphi 0, %s15
      %p12 = scmp.ge.s32.totalorder %s11, 4
      %s21 = sphi 0, %s23
      %s24 = sphi 0, %s21
      %s25 = sphi 0, %s24
      %s41 = sphi 0, %s25
      %s45 = sphi 0, %s45
      %s47 = sphi 0, %s45
      %s48 = sphi 0, %s47
      %s62 = sphi 0, %s48
      %s68 = sphi 0, %s70
      %s71 = sphi 0, %s68
      %s72 = sphi 0, %s71
      %s88 = sphi 0, %s72
    $region4: #{tpu_custom_call.1} parent=1 // loop_header_branch
      %14 = sbr.rel (%p12) target = $region8
    $region5: #{tpu_custom_call.1} parent=1 // loop_body
      %s16 = ssub.s32 %s11, 1
      %s17 = ssub.s32 %s11, 2
      %s18 = sadd.s32 %s11, 1
      %s19 = ssub.s32 %s11, %s18
      %p20 = scmp.eq.s32.totalorder %s19, 0
      %s22 = sadd.s32 %s21, 1
      %s23 = scalar_select %p20, %s21, %s22
      %p26 = pneg %p20
      %p27 = scmp.eq.s32.totalorder %s11, 1
      %p28 = por %p26, %p27
      %p29 = scmp.ne.s32.totalorder %s21, %s24
      %p30 = scmp.eq.s32.totalorder %s11, 0
      %p31 = por %p29, %p30
      %p32 = scmp.ne.s32.totalorder %s21, %s24
      %p33 = scmp.eq.s32.totalorder %s16, 1
      %p34 = por %p32, %p33
      %p35 = scmp.ne.s32.totalorder %s24, %s25
      %p36 = scmp.eq.s32.totalorder %s16, 0
      %p37 = por %p35, %p36
      %p38 = scmp.ne.s32.totalorder %s24, %s25
      %p39 = scmp.eq.s32.totalorder %s17, 1
      %p40 = por %p38, %p39
      %p42 = scmp.ne.s32.totalorder %s25, %s41
      %p43 = scmp.eq.s32.totalorder %s17, 0
      %p44 = por %p42, %p43
      %s46 = sadd.s32 %s45, 1
      %p49 = scmp.eq.s32.totalorder %s11, 1
      %p50 = scmp.ne.s32.totalorder %s45, %s47
      %p51 = scmp.eq.s32.totalorder %s11, 0
      %p52 = por %p50, %p51
      %p53 = scmp.ne.s32.totalorder %s45, %s47
      %p54 = scmp.eq.s32.totalorder %s16, 1
      %p55 = por %p53, %p54
      %p56 = scmp.ne.s32.totalorder %s47, %s48
      %p57 = scmp.eq.s32.totalorder %s16, 0
      %p58 = por %p56, %p57
      %p59 = scmp.ne.s32.totalorder %s47, %s48
      %p60 = scmp.eq.s32.totalorder %s17, 1
      %p61 = por %p59, %p60
      %p63 = scmp.ne.s32.totalorder %s48, %s62
      %p64 = scmp.eq.s32.totalorder %s17, 0
      %p65 = por %p63, %p64
      %s66 = ssub.s32 %s11, %s18
      %p67 = scmp.eq.s32.totalorder %s66, 0
      %s69 = sadd.s32 %s68, 1
      %s70 = scalar_select %p67, %s68, %s69
      %p73 = pneg %p67
      %p74 = scmp.eq.s32.totalorder %s11, 1
      %p75 = por %p73, %p74
      %p76 = scmp.ne.s32.totalorder %s68, %s71
      %p77 = scmp.eq.s32.totalorder %s11, 0
      %p78 = por %p76, %p77
      %p79 = scmp.ne.s32.totalorder %s68, %s71
      %p80 = scmp.eq.s32.totalorder %s16, 1
      %p81 = por %p79, %p80
      %p82 = scmp.ne.s32.totalorder %s71, %s72
      %p83 = scmp.eq.s32.totalorder %s16, 0
      %p84 = por %p82, %p83
      %p85 = scmp.ne.s32.totalorder %s71, %s72
      %p86 = scmp.eq.s32.totalorder %s17, 1
      %p87 = por %p85, %p86
      %p89 = scmp.ne.s32.totalorder %s72, %s88
      %p90 = scmp.eq.s32.totalorder %s17, 0
      %p91 = por %p89, %p90
      %p92 = scmp.le.s32.totalorder 1, %s11
      %p93 = scmp.lt.s32.totalorder %s11, 3
      %p94 = pnand %p92, %p93
      %p95 = pneg %p94
      // Predicated region
      $region9: #{tpu_custom_call.1} parent=5 // pred_check
        _
      $region10: #{tpu_custom_call.1} parent=5 // pred_check_branch
        %97 = sbr.rel (%p94) target = $region12
      $region11: #{tpu_custom_call.1} parent=5 // pred_region
        %s98 = ssub.s32 %s11, 1
        // Predicated region
        $region13: #{tpu_custom_call.1} parent=11 // pred_check
          %p99 = pneg %p58
        $region14: #{tpu_custom_call.1} parent=11 // pred_check_branch
          %101 = sbr.rel (%p99) target = $region16
        $region15: #{tpu_custom_call.1} parent=11 // pred_region
          _
        $region16: #{tpu_custom_call.1} parent=11 // pred_fallthru
          _
      $region12: #{tpu_custom_call.1} parent=5 // pred_fallthru
        _
      %p102 = scmp.lt.s32.totalorder %s11, 2
      // Predicated region
      $region17: #{tpu_custom_call.1} parent=5 // pred_check
        %p103 = pneg %p102
      $region18: #{tpu_custom_call.1} parent=5 // pred_check_branch
        %105 = sbr.rel (%p103) target = $region20
      $region19: #{tpu_custom_call.1} parent=5 // pred_region
        // Predicated region
        $region21: #{tpu_custom_call.1} parent=19 // pred_check
          %p106 = pneg %p31
        $region22: #{tpu_custom_call.1} parent=19 // pred_check_branch
          %108 = sbr.rel (%p106) target = $region24
        $region23: #{tpu_custom_call.1} parent=19 // pred_region
          %p109 = scmp.lt.s32.totalorder %s11, 1
          %s110 = scalar_select %p109, %s11, 1
          %s111 = smul.addr %s110, 4
          %s112 = smul.addr %s111, 8
          %s113 = scalar_lea.vmem %s0, %s112
        $region24: #{tpu_custom_call.1} parent=19 // pred_fallthru
          _
      $region20: #{tpu_custom_call.1} parent=5 // pred_fallthru
        _
      %p114 = scmp.le.s32.totalorder 1, %s11
      %p115 = scmp.lt.s32.totalorder %s11, 3
      %p116 = pnand %p114, %p115
      %p117 = pneg %p116
      // Predicated region
      $region25: #{tpu_custom_call.1} parent=5 // pred_check
        _
      $region26: #{tpu_custom_call.1} parent=5 // pred_check_branch
        %119 = sbr.rel (%p116) target = $region28
      $region27: #{tpu_custom_call.1} parent=5 // pred_region
        %s120 = ssub.s32 %s11, 1
        %p121 = scmp.lt.s32.totalorder %s16, 1
        %s122 = scalar_select %p121, %s16, 1
        %s123 = smul.addr %s122, 4
        %s124 = smul.addr %s123, 8
        %s125 = scalar_lea.vmem %s0, %s124
        %p126 = pneg %p37
        %p127 = pneg %p34
        %p128 = pneg %p58
        %p129 = pneg %p55
        %p130 = pneg %p84
        %p131 = pneg %p81
        %s132 = sand.u32 %s71, 1
        %s133 = scalar_lea.sflag [#allocation3], %s132
        %s134 = sand.u32 %s71, 1
        %s135 = smul.addr %s134, 8
        %s136 = scalar_lea.vmem [#allocation2], %s135
        %p137 = scmp.lt.s32.totalorder %s16, 1
        %s138 = scalar_select %p137, %s16, 1
        %s139 = smul.addr %s138, 4
        %s140 = smul.addr %s139, 8
        %s141 = scalar_lea.vmem %s0, %s140
        %v142 = vld [vmem:[%s141] sm:$0xff]
        %v143 = vld [vmem:[%s141 + $0x8] sm:$0xff]
        %v144 = vld [vmem:[%s141 + $0x10] sm:$0xff]
        %v145 = vld [vmem:[%s141 + $0x18] sm:$0xff]
        %v146 = vld [vmem:[%s1] sm:$0xff]
        %v147 = vld [vmem:[%s1 + $0x8] sm:$0xff]
        %v148 = vld [vmem:[%s1 + $0x10] sm:$0xff]
        %v149 = vld [vmem:[%s1 + $0x18] sm:$0xff]
        %v150 = vld [vmem:[%s1 + $0x20] sm:$0xff]
        %v151 = vld [vmem:[%s1 + $0x28] sm:$0xff]
        %v152 = vld [vmem:[%s1 + $0x30] sm:$0xff]
        %v153 = vld [vmem:[%s1 + $0x38] sm:$0xff]
        %v154 = vld [vmem:[%s1 + $0x40] sm:$0xff]
        %v155 = vld [vmem:[%s1 + $0x48] sm:$0xff]
        %v156 = vld [vmem:[%s1 + $0x50] sm:$0xff]
        %v157 = vld [vmem:[%s1 + $0x58] sm:$0xff]
        %v158 = vld [vmem:[%s1 + $0x60] sm:$0xff]
        %v159 = vld [vmem:[%s1 + $0x68] sm:$0xff]
        %v160 = vld [vmem:[%s1 + $0x70] sm:$0xff]
        %v161 = vld [vmem:[%s1 + $0x78] sm:$0xff]
        %v162 = vld [vmem:[%s1 + $0x80] sm:$0xff]
        %v163 = vld [vmem:[%s1 + $0x88] sm:$0xff]
        %v164 = vld [vmem:[%s1 + $0x90] sm:$0xff]
        %v165 = vld [vmem:[%s1 + $0x98] sm:$0xff]
        %v166 = vld [vmem:[%s1 + $0xa0] sm:$0xff]
        %v167 = vld [vmem:[%s1 + $0xa8] sm:$0xff]
        %v168 = vld [vmem:[%s1 + $0xb0] sm:$0xff]
        %v169 = vld [vmem:[%s1 + $0xb8] sm:$0xff]
        %v170 = vld [vmem:[%s1 + $0xc0] sm:$0xff]
        %v171 = vld [vmem:[%s1 + $0xc8] sm:$0xff]
        %v172 = vld [vmem:[%s1 + $0xd0] sm:$0xff]
        %v173 = vld [vmem:[%s1 + $0xd8] sm:$0xff]
        %v174 = vld [vmem:[%s1 + $0xe0] sm:$0xff]
        %v175 = vld [vmem:[%s1 + $0xe8] sm:$0xff]
        %v176 = vld [vmem:[%s1 + $0xf0] sm:$0xff]
        %v177 = vld [vmem:[%s1 + $0xf8] sm:$0xff]
        %178 = vmatprep.subr.mxu0 0.0
        %179 = vmatpush1.msra.mxu0 %v146
        %180 = vmatprep.subr.mxu0 0.0
        %181 = vmatpush1.msra.mxu0 %v147
        %182 = vmatprep.subr.mxu0 0.0
        %183 = vmatpush1.msra.mxu0 %v148
        %184 = vmatprep.subr.mxu0 0.0
        %185 = vmatpush1.msra.mxu0 %v149
        %186 = vmatprep.subr.mxu0 0.0
        %187 = vmatpush1.msra.mxu0 %v150
        %188 = vmatprep.subr.mxu0 0.0
        %189 = vmatpush1.msra.mxu0 %v151
        %190 = vmatprep.subr.mxu0 0.0
        %191 = vmatpush1.msra.mxu0 %v152
        %192 = vmatprep.subr.mxu0 0.0
        %193 = vmatpush1.msra.mxu0 %v153
        %194 = vmatprep.subr.mxu0 0.0
        %195 = vmatpush1.msra.mxu0 %v154
        %196 = vmatprep.subr.mxu0 0.0
        %197 = vmatpush1.msra.mxu0 %v155
        %198 = vmatprep.subr.mxu0 0.0
        %199 = vmatpush1.msra.mxu0 %v156
        %200 = vmatprep.subr.mxu0 0.0
        %201 = vmatpush1.msra.mxu0 %v157
        %202 = vmatprep.subr.mxu0 0.0
        %203 = vmatpush1.msra.mxu0 %v158
        %204 = vmatprep.subr.mxu0 0.0
        %205 = vmatpush1.msra.mxu0 %v159
        %206 = vmatprep.subr.mxu0 0.0
        %207 = vmatpush1.msra.mxu0 %v160
        %208 = vmatprep.subr.mxu0 0.0
        %209 = vmatpush1.msra.mxu0 %v161
        %210 = vmatprep.subr.mxu0 0.0
        %211 = vmatpush1.msra.mxu0 %v162
        %212 = vmatprep.subr.mxu0 0.0
        %213 = vmatpush1.msra.mxu0 %v163
        %214 = vmatprep.subr.mxu0 0.0
        %215 = vmatpush1.msra.mxu0 %v164
        %216 = vmatprep.subr.mxu0 0.0
        %217 = vmatpush1.msra.mxu0 %v165
        %218 = vmatprep.subr.mxu0 0.0
        %219 = vmatpush1.msra.mxu0 %v166
        %220 = vmatprep.subr.mxu0 0.0
        %221 = vmatpush1.msra.mxu0 %v167
        %222 = vmatprep.subr.mxu0 0.0
        %223 = vmatpush1.msra.mxu0 %v168
        %224 = vmatprep.subr.mxu0 0.0
        %225 = vmatpush1.msra.mxu0 %v169
        %226 = vmatprep.subr.mxu0 0.0
        %227 = vmatpush1.msra.mxu0 %v170
        %228 = vmatprep.subr.mxu0 0.0
        %229 = vmatpush1.msra.mxu0 %v171
        %230 = vmatprep.subr.mxu0 0.0
        %231 = vmatpush1.msra.mxu0 %v172
        %232 = vmatprep.subr.mxu0 0.0
        %233 = vmatpush1.msra.mxu0 %v173
        %234 = vmatprep.subr.mxu0 0.0
        %235 = vmatpush1.msra.mxu0 %v174
        %236 = vmatprep.subr.mxu0 0.0
        %237 = vmatpush1.msra.mxu0 %v175
        %238 = vmatprep.subr.mxu0 0.0
        %239 = vmatpush1.msra.mxu0 %v176
        %240 = vmatprep.subr.mxu0 0.0
        %241 = vmatpush1.msra.mxu0 %v177
        %242 = vmatprep.mubr.f32.mxu0 %v143
        %243 = vmatmul.mubr.f32.gmra.mrb[0].mxu0 %v142
        %v244 = vpop.f32.mrb[0].mxu0
        %v245 = vadd.f32 0.0, %v244
        %v246 = vpop.f32.mrb[0].mxu0
        %247 = vdwg.mxu0
        %248 = vmatprep.subr.mxu0 0.0
        %249 = vmatpush1.msra.mxu0 %v146
        %250 = vmatprep.subr.mxu0 0.0
        %251 = vmatpush1.msra.mxu0 %v147
        %252 = vmatprep.subr.mxu0 0.0
        %253 = vmatpush1.msra.mxu0 %v148
        %254 = vmatprep.subr.mxu0 0.0
        %255 = vmatpush1.msra.mxu0 %v149
        %256 = vmatprep.subr.mxu0 0.0
        %257 = vmatpush1.msra.mxu0 %v150
        %258 = vmatprep.subr.mxu0 0.0
        %259 = vmatpush1.msra.mxu0 %v151
        %260 = vmatprep.subr.mxu0 0.0
        %261 = vmatpush1.msra.mxu0 %v152
        %262 = vmatprep.subr.mxu0 0.0
        %263 = vmatpush1.msra.mxu0 %v153
        %264 = vmatprep.subr.mxu0 0.0
        %265 = vmatpush1.msra.mxu0 %v154
        %266 = vmatprep.subr.mxu0 0.0
        %267 = vmatpush1.msra.mxu0 %v155
        %268 = vmatprep.subr.mxu0 0.0
        %269 = vmatpush1.msra.mxu0 %v156
        %270 = vmatprep.subr.mxu0 0.0
        %271 = vmatpush1.msra.mxu0 %v157
        %272 = vmatprep.subr.mxu0 0.0
        %273 = vmatpush1.msra.mxu0 %v158
        %274 = vmatprep.subr.mxu0 0.0
        %275 = vmatpush1.msra.mxu0 %v159
        %276 = vmatprep.subr.mxu0 0.0
        %277 = vmatpush1.msra.mxu0 %v160
        %278 = vmatprep.subr.mxu0 0.0
        %279 = vmatpush1.msra.mxu0 %v161
        %280 = vmatprep.subr.mxu0 0.0
        %281 = vmatpush1.msra.mxu0 %v162
        %282 = vmatprep.subr.mxu0 0.0
        %283 = vmatpush1.msra.mxu0 %v163
        %284 = vmatprep.subr.mxu0 0.0
        %285 = vmatpush1.msra.mxu0 %v164
        %286 = vmatprep.subr.mxu0 0.0
        %287 = vmatpush1.msra.mxu0 %v165
        %288 = vmatprep.subr.mxu0 0.0
        %289 = vmatpush1.msra.mxu0 %v166
        %290 = vmatprep.subr.mxu0 0.0
        %291 = vmatpush1.msra.mxu0 %v167
        %292 = vmatprep.subr.mxu0 0.0
        %293 = vmatpush1.msra.mxu0 %v168
        %294 = vmatprep.subr.mxu0 0.0
        %295 = vmatpush1.msra.mxu0 %v169
        %296 = vmatprep.subr.mxu0 0.0
        %297 = vmatpush1.msra.mxu0 %v170
        %298 = vmatprep.subr.mxu0 0.0
        %299 = vmatpush1.msra.mxu0 %v171
        %300 = vmatprep.subr.mxu0 0.0
        %301 = vmatpush1.msra.mxu0 %v172
        %302 = vmatprep.subr.mxu0 0.0
        %303 = vmatpush1.msra.mxu0 %v173
        %304 = vmatprep.subr.mxu0 0.0
        %305 = vmatpush1.msra.mxu0 %v174
        %306 = vmatprep.subr.mxu0 0.0
        %307 = vmatpush1.msra.mxu0 %v175
        %308 = vmatprep.subr.mxu0 0.0
        %309 = vmatpush1.msra.mxu0 %v176
        %310 = vmatprep.subr.mxu0 0.0
        %311 = vmatpush1.msra.mxu0 %v177
        %312 = vmatprep.mubr.f32.mxu0 %v145
        %313 = vmatmul.mubr.f32.gmra.mrb[0].mxu0 %v144
        %v314 = vpop.f32.mrb[0].mxu0
        %v315 = vadd.f32 0.0, %v314
        %v316 = vpop.f32.mrb[0].mxu0
        %317 = vdwg.mxu0
        %319 = vrot.lane.b32.xlu0 %v315, 64
        %v320 = vpop.permute.xlu0 %319
        %vm322 = vcmask 523264
        %v323 = vsel %vm322, %v245, %v320
        %324 = vst [vmem:[%s136] sm:$0xff] %v323
        %s325 = sand.u32 %s71, 1
        %s326 = scalar_lea.sflag [#allocation3], %s325
        %s327 = sand.u32 %s71, 1
        %s328 = smul.addr %s327, 8
        %s329 = scalar_lea.vmem [#allocation2], %s328
        // Predicated region
        $region29: #{tpu_custom_call.1} parent=27 // pred_check
          %p330 = pneg %p81
        $region30: #{tpu_custom_call.1} parent=27 // pred_check_branch
          %332 = sbr.rel (%p330) target = $region32
        $region31: #{tpu_custom_call.1} parent=27 // pred_region
          %s334 = ssub.s32 128, 128
          %335 = vsyncadd %s326, %s334
          %s336 = smul.addr %s16, 128
          %s337 = scalar_lea.hbm %s2, %s336
          %s339 = sshll.u32 %s329, 4
          %s340 = int_to_ptr.vmem [resolvable:$true] %s339
          %342 = dma.vmem_to_hbm [thread:$0]  %s340, 128, %s337, %s326
        $region32: #{tpu_custom_call.1} parent=27 // pred_fallthru
          _
      $region28: #{tpu_custom_call.1} parent=5 // pred_fallthru
        _
      %p343 = scmp.le.s32.totalorder 2, %s11
      // Predicated region
      $region33: #{tpu_custom_call.1} parent=5 // pred_check
        %p344 = pneg %p343
      $region34: #{tpu_custom_call.1} parent=5 // pred_check_branch
        %346 = sbr.rel (%p344) target = $region36
      $region35: #{tpu_custom_call.1} parent=5 // pred_region
        %s347 = ssub.s32 %s11, 2
        // Predicated region
        $region37: #{tpu_custom_call.1} parent=35 // pred_check
          %p348 = pneg %p87
        $region38: #{tpu_custom_call.1} parent=35 // pred_check_branch
          %350 = sbr.rel (%p348) target = $region40
        $region39: #{tpu_custom_call.1} parent=35 // pred_region
          %s351 = sand.u32 %s72, 1
          %s352 = scalar_lea.sflag [#allocation3], %s351
          %s353 = sand.u32 %s72, 1
          %s354 = smul.addr %s353, 8
          %s355 = scalar_lea.vmem [#allocation2], %s354
          %356 = dma.done %s352, 128
        $region40: #{tpu_custom_call.1} parent=35 // pred_fallthru
          _
      $region36: #{tpu_custom_call.1} parent=5 // pred_fallthru
        _
    $region6: #{tpu_custom_call.1} parent=1 // loop_footer
      %s15 = sadd.s32 1, %s11
    $region7: #{tpu_custom_call.1} parent=1 // loop_footer_branch
      %10 = sbr.rel target = $region3
    $region8: #{tpu_custom_call.1} parent=1 // loop_exit
      _
    %357 = vsyncpa [#allocation3], 1
    %s358 = scalar_lea.sflag [#allocation3], 1
    %359 = vsyncpa %s358, 1

</llo_original>
